<compile_context>
chip_gen: v6e
topology: v6e:2x2x1
jax: 0.10.0
libtpu: 0.0.40
codegen_flags: <defaults>
</compile_context>

<pallas_src>
import jax
import jax.numpy as jnp
from jax.experimental import pallas as pl
from jax.experimental.pallas import tpu as pltpu

EXER_N = 16          # args.exer_n
STUDENT_N = 16       # args.student_n
KNOWLEDGE_N = 128    # args.knowledge_n
N_NODES = EXER_N + STUDENT_N
TB_MAX = 128         # batch elements per grid step (VMEM-safe on all gens)


def _expression_double_eva_kernel(exer_ref, stu_ref, adj_ref, w12_ref,
                                  out_ref, out_per_ref):
    tb = exer_ref.shape[0]
    stu_f32 = stu_ref[...]                                       # (tb,16,128) f32

    # Concatenate exercise + student nodes along the node (sublane) axis.
    nodes = jnp.concatenate([exer_ref[...], stu_f32.astype(jnp.bfloat16)],
                            axis=1)                              # (tb,32,128) bf16

    # Fused adjacency stage (student rows only):
    #   t[b] = A[exer_n:, :] @ cat(exer[b], stu[b])
    adj_b = jnp.broadcast_to(adj_ref[...], (tb, STUDENT_N, N_NODES))
    t = jnp.einsum('bsn,bnk->bsk', adj_b, nodes,
                   preferred_element_type=jnp.float32)           # (tb,16,128) f32

    # Fused weight matmul, batch collapsed into M for full MXU occupancy:
    #   (tb*16, 128) @ (128, 256) -> (tb*16, 256), columns = W1 | W2.
    t2 = t.reshape(tb * STUDENT_N, KNOWLEDGE_N).astype(jnp.bfloat16)
    g = jnp.dot(t2, w12_ref[...], preferred_element_type=jnp.float32)

    # all_stu_emb     = all_stu_emb + u_from_e_graph[exer_n:]
    # all_stu_emb_per = all_stu_emb + u_from_e_graph_per[exer_n:]
    stu2 = stu_f32.reshape(tb * STUDENT_N, KNOWLEDGE_N)
    out_ref[...] = (stu2 + g[:, :KNOWLEDGE_N]).reshape(
        tb, STUDENT_N, KNOWLEDGE_N)
    out_per_ref[...] = (stu2 + g[:, KNOWLEDGE_N:]).reshape(
        tb, STUDENT_N, KNOWLEDGE_N)


def prepare_graph_params(adj, w1, w2):
    """Hoistable prep: call once per training run, not per step."""
    adj_cat = adj[EXER_N:, :].astype(jnp.bfloat16)                   # [16, 32]
    w12 = jnp.concatenate([w1, w2], axis=1).astype(jnp.bfloat16)     # [128, 256]
    return adj_cat, w12


def expression_double_eva(exer_emb, all_stu_emb, adj=None, w1=None, w2=None,
                          *, prepared=None, tb_max=TB_MAX):
    """exer_emb/all_stu_emb: [.., EXER_N/STUDENT_N, KNOWLEDGE_N] (optionally
    with a leading batch axis).  adj: [N_NODES, N_NODES].  w1/w2: [K, K].
    Pass prepared=prepare_graph_params(adj, w1, w2) to skip per-call prep."""
    single = exer_emb.ndim == 2
    if single:
        exer_emb = exer_emb[None]
        all_stu_emb = all_stu_emb[None]
    b_dim = exer_emb.shape[0]

    if prepared is None:
        prepared = prepare_graph_params(adj, w1, w2)
    adj_cat, w12 = prepared

    # Batch tiling: a single block for small batches, TB_MAX-sized blocks
    # (padded) for large ones.
    tb = min(b_dim, tb_max)
    n_blocks = (b_dim + tb - 1) // tb
    padded_b = n_blocks * tb

    exer_b16 = exer_emb.astype(jnp.bfloat16)      # halve exer DMA bytes
    stu_f32 = all_stu_emb.astype(jnp.float32)     # f32 for the residual add
    if padded_b != b_dim:
        pad = padded_b - b_dim
        exer_b16 = jnp.pad(exer_b16, ((0, pad), (0, 0), (0, 0)))
        stu_f32 = jnp.pad(stu_f32, ((0, pad), (0, 0), (0, 0)))

    out_sd = jax.ShapeDtypeStruct((padded_b, STUDENT_N, KNOWLEDGE_N),
                                  jnp.float32)

    flops_per_b = (2 * STUDENT_N * N_NODES * KNOWLEDGE_N          # adjacency
                   + 2 * STUDENT_N * KNOWLEDGE_N * 2 * KNOWLEDGE_N)  # W1|W2
    bytes_per_b = (EXER_N * KNOWLEDGE_N * 2            # exer bf16
                   + STUDENT_N * KNOWLEDGE_N * 4       # stu f32
                   + 2 * STUDENT_N * KNOWLEDGE_N * 4)  # two f32 outputs
    shared_bytes = STUDENT_N * N_NODES * 2 + KNOWLEDGE_N * 2 * KNOWLEDGE_N * 2
    cost = pl.CostEstimate(flops=padded_b * flops_per_b,
                           transcendentals=0,
                           bytes_accessed=padded_b * bytes_per_b + shared_bytes)

    out, out_per = pl.pallas_call(
        _expression_double_eva_kernel,
        out_shape=(out_sd, out_sd),
        grid=(n_blocks,),
        in_specs=[
            pl.BlockSpec((tb, EXER_N, KNOWLEDGE_N), lambda i: (i, 0, 0)),
            pl.BlockSpec((tb, STUDENT_N, KNOWLEDGE_N), lambda i: (i, 0, 0)),
            pl.BlockSpec((STUDENT_N, N_NODES), lambda i: (0, 0)),
            pl.BlockSpec((KNOWLEDGE_N, 2 * KNOWLEDGE_N), lambda i: (0, 0)),
        ],
        out_specs=(
            pl.BlockSpec((tb, STUDENT_N, KNOWLEDGE_N), lambda i: (i, 0, 0)),
            pl.BlockSpec((tb, STUDENT_N, KNOWLEDGE_N), lambda i: (i, 0, 0)),
        ),
        compiler_params=pltpu.CompilerParams(
            dimension_semantics=("parallel",)),
        cost_estimate=cost,
    )(exer_b16, stu_f32, adj_cat, w12)

    if padded_b != b_dim:
        out, out_per = out[:b_dim], out_per[:b_dim]
    if single:
        out, out_per = out[0], out_per[0]
    return out, out_per


if __name__ == "__main__":
    key = jax.random.PRNGKey(0)
    k1, k2, k3, k4, k5 = jax.random.split(key, 5)

    BATCH = 4
    exer_emb = jax.random.normal(k1, (BATCH, EXER_N, KNOWLEDGE_N), jnp.float32)
    all_stu_emb = jax.random.normal(k2, (BATCH, STUDENT_N, KNOWLEDGE_N),
                                    jnp.float32)

    # Deterministic graph-layer parameters.
    adj_raw = jax.random.uniform(k3, (N_NODES, N_NODES), jnp.float32) + 0.1
    adj = adj_raw / jnp.sum(adj_raw, axis=1, keepdims=True)   # row-normalized
    w1 = jax.random.normal(k4, (KNOWLEDGE_N, KNOWLEDGE_N), jnp.float32) * 0.05
    w2 = jax.random.normal(k5, (KNOWLEDGE_N, KNOWLEDGE_N), jnp.float32) * 0.05

    prepared = prepare_graph_params(adj, w1, w2)   # hoisted prep

    # Plain-JAX f32 reference of the module forward (vectorized over batch).
    # bf16 MXU inputs with f32 accumulation -> loosened tolerance.
    e_u = jnp.concatenate([exer_emb, all_stu_emb], axis=1)        # (B,32,128)
    ref = all_stu_emb + jnp.einsum('sn,bnk->bsk', adj[EXER_N:], e_u @ w1)
    ref_per = all_stu_emb + jnp.einsum('sn,bnk->bsk', adj[EXER_N:], e_u @ w2)

    # Batched call (single block: whole batch in one grid step).
    out, out_per = expression_double_eva(exer_emb, all_stu_emb,
                                         prepared=prepared)
    jax.block_until_ready((out, out_per))
    assert jnp.allclose(out, ref, atol=2e-2, rtol=2e-2)
    assert jnp.allclose(out_per, ref_per, atol=2e-2, rtol=2e-2)

    # Ragged-grid call (tb=3 -> 2 blocks with padding) to validate tiling path.
    out_r, out_per_r = expression_double_eva(exer_emb, all_stu_emb, adj, w1, w2,
                                             tb_max=3)
    jax.block_until_ready((out_r, out_per_r))
    assert jnp.allclose(out_r, ref, atol=2e-2, rtol=2e-2)
    assert jnp.allclose(out_per_r, ref_per, atol=2e-2, rtol=2e-2)

    # Single-pair call (exact signature of the torch module forward).
    out1, out1_per = expression_double_eva(exer_emb[0], all_stu_emb[0],
                                           adj, w1, w2)
    jax.block_until_ready((out1, out1_per))
    assert jnp.allclose(out1, out[0], atol=1e-5, rtol=1e-5)
    assert jnp.allclose(out1_per, out_per[0], atol=1e-5, rtol=1e-5)

    print("KERNEL_OK")
</pallas_src>

<mosaic_0001>
module attributes {stable_mosaic.version = 11 : i64} {
  func.func @_expression_double_eva_kernel(%arg0: i32, %arg1: memref<4x16x128xbf16, #tpu.memory_space<vmem>>, %arg2: memref<4x16x128xf32, #tpu.memory_space<vmem>>, %arg3: memref<16x32xbf16, #tpu.memory_space<vmem>>, %arg4: memref<128x256xbf16, #tpu.memory_space<vmem>>, %arg5: memref<4x16x128xf32, #tpu.memory_space<vmem>>, %arg6: memref<4x16x128xf32, #tpu.memory_space<vmem>>) attributes {dimension_semantics = [#tpu.dimension_semantics<parallel>], iteration_bounds = array<i64: 1>, scalar_prefetch = 0 : i64, scratch_operands = 0 : i64, tpu.core_type = #tpu.core_type<tc>, window_params = [{transform_indices = @transform_0, window_bounds = array<i64: 4, 16, 128>}, {transform_indices = @transform_1, window_bounds = array<i64: 4, 16, 128>}, {pipeline_mode = #tpu.pipeline_mode<synchronous>, transform_indices = @transform_2, window_bounds = array<i64: 16, 32>}, {pipeline_mode = #tpu.pipeline_mode<synchronous>, transform_indices = @transform_3, window_bounds = array<i64: 128, 256>}, {transform_indices = @transform_4, window_bounds = array<i64: 4, 16, 128>}, {transform_indices = @transform_5, window_bounds = array<i64: 4, 16, 128>}]} {
    %c0 = arith.constant 0 : index
    %c0_0 = arith.constant 0 : index
    %c0_1 = arith.constant 0 : index
    %0 = vector.load %arg2[%c0, %c0_0, %c0_1] : memref<4x16x128xf32, #tpu.memory_space<vmem>>, vector<4x16x128xf32>
    %c0_2 = arith.constant 0 : index
    %c0_3 = arith.constant 0 : index
    %c0_4 = arith.constant 0 : index
    %1 = vector.load %arg1[%c0_2, %c0_3, %c0_4] : memref<4x16x128xbf16, #tpu.memory_space<vmem>>, vector<4x16x128xbf16>
    %2 = arith.truncf %0 : vector<4x16x128xf32> to vector<4x16x128xbf16>
    %3 = tpu.concatenate %1, %2 in 1 : vector<4x16x128xbf16>, vector<4x16x128xbf16> -> vector<4x32x128xbf16>
    %c0_5 = arith.constant 0 : index
    %c0_6 = arith.constant 0 : index
    %4 = vector.load %arg3[%c0_5, %c0_6] : memref<16x32xbf16, #tpu.memory_space<vmem>>, vector<16x32xbf16>
    %5 = vector.shape_cast %4 : vector<16x32xbf16> to vector<1x16x32xbf16>
    %6 = vector.broadcast %5 : vector<1x16x32xbf16> to vector<4x16x32xbf16>
    "tpu.trace_start"() <{level = 10 : i32, message = "bsn,bnk->bsk"}> : () -> ()
    %cst = arith.constant dense<0.000000e+00> : vector<4x16x128xf32>
    %7 = tpu.matmul %6, %3, %cst {dimension_numbers = #tpu.dot_dimension_numbers<[2], [1], [1], [2], [0, 0, 0, 1, 1, 2], [0], [0]>} : vector<4x16x32xbf16>, vector<4x32x128xbf16>, vector<4x16x128xf32> -> vector<4x16x128xf32>
    "tpu.trace_stop"() : () -> ()
    %8 = vector.shape_cast %7 : vector<4x16x128xf32> to vector<64x128xf32>
    %9 = arith.truncf %8 : vector<64x128xf32> to vector<64x128xbf16>
    %c0_7 = arith.constant 0 : index
    %c0_8 = arith.constant 0 : index
    %10 = vector.load %arg4[%c0_7, %c0_8] : memref<128x256xbf16, #tpu.memory_space<vmem>>, vector<128x256xbf16>
    %cst_9 = arith.constant dense<0.000000e+00> : vector<64x256xf32>
    %11 = tpu.matmul %9, %10, %cst_9 {dimension_numbers = #tpu.dot_dimension_numbers<[1], [0], [0], [1], [0, 0, 1, 1], [], []>} : vector<64x128xbf16>, vector<128x256xbf16>, vector<64x256xf32> -> vector<64x256xf32>
    %12 = vector.shape_cast %0 : vector<4x16x128xf32> to vector<64x128xf32>
    %13 = vector.extract_strided_slice %11 {offsets = [0, 0], sizes = [64, 128], strides = [1, 1]} : vector<64x256xf32> to vector<64x128xf32>
    %14 = arith.addf %12, %13 : vector<64x128xf32>
    %15 = vector.shape_cast %14 : vector<64x128xf32> to vector<4x16x128xf32>
    %c0_10 = arith.constant 0 : index
    %c0_11 = arith.constant 0 : index
    %c0_12 = arith.constant 0 : index
    %16 = vector.load %arg5[%c0_10, %c0_11, %c0_12] : memref<4x16x128xf32, #tpu.memory_space<vmem>>, vector<4x16x128xf32>
    tpu.vector_store %arg5[%c0_10, %c0_11, %c0_12], %15 {strides = array<i32>} : memref<4x16x128xf32, #tpu.memory_space<vmem>>, vector<4x16x128xf32>,
    %17 = vector.extract_strided_slice %11 {offsets = [0, 128], sizes = [64, 128], strides = [1, 1]} : vector<64x256xf32> to vector<64x128xf32>
    %18 = arith.addf %12, %17 : vector<64x128xf32>
    %19 = vector.shape_cast %18 : vector<64x128xf32> to vector<4x16x128xf32>
    %c0_13 = arith.constant 0 : index
    %c0_14 = arith.constant 0 : index
    %c0_15 = arith.constant 0 : index
    %20 = vector.load %arg6[%c0_13, %c0_14, %c0_15] : memref<4x16x128xf32, #tpu.memory_space<vmem>>, vector<4x16x128xf32>
    tpu.vector_store %arg6[%c0_13, %c0_14, %c0_15], %19 {strides = array<i32>} : memref<4x16x128xf32, #tpu.memory_space<vmem>>, vector<4x16x128xf32>,
    return
  }
  func.func @transform_0(%arg0: i32) -> (i32, i32, i32) {
    %c0_i32 = arith.constant 0 : i32
    %c0_i32_0 = arith.constant 0 : i32
    %c0_i32_1 = arith.constant 0 : i32
    return %arg0, %c0_i32, %c0_i32_0 : i32, i32, i32
  }
  func.func @transform_1(%arg0: i32) -> (i32, i32, i32) {
    %c0_i32 = arith.constant 0 : i32
    %c0_i32_0 = arith.constant 0 : i32
    %c0_i32_1 = arith.constant 0 : i32
    return %arg0, %c0_i32, %c0_i32_0 : i32, i32, i32
  }
  func.func @transform_2(%arg0: i32) -> (i32, i32) {
    %c0_i32 = arith.constant 0 : i32
    %c0_i32_0 = arith.constant 0 : i32
    %c0_i32_1 = arith.constant 0 : i32
    return %c0_i32, %c0_i32_0 : i32, i32
  }
  func.func @transform_3(%arg0: i32) -> (i32, i32) {
    %c0_i32 = arith.constant 0 : i32
    %c0_i32_0 = arith.constant 0 : i32
    %c0_i32_1 = arith.constant 0 : i32
    return %c0_i32, %c0_i32_0 : i32, i32
  }
  func.func @transform_4(%arg0: i32) -> (i32, i32, i32) {
    %c0_i32 = arith.constant 0 : i32
    %c0_i32_0 = arith.constant 0 : i32
    %c0_i32_1 = arith.constant 0 : i32
    return %arg0, %c0_i32, %c0_i32_0 : i32, i32, i32
  }
  func.func @transform_5(%arg0: i32) -> (i32, i32, i32) {
    %c0_i32 = arith.constant 0 : i32
    %c0_i32_0 = arith.constant 0 : i32
    %c0_i32_1 = arith.constant 0 : i32
    return %arg0, %c0_i32, %c0_i32_0 : i32, i32, i32
  }
}

</mosaic_0001>

<llo_original>
// kernel: tpu_custom_call.1
$region0: #{tpu_custom_call.1}
  #allocation0 [shape = 'u32[]', space=smem, size = 0x4, offset = 0x4, fixed_abs, tag = 'smem constant byte address 0x4 - core index']
  #allocation1 [shape = 'u32[144,128]{1,0:T(1,128)}', space=vmem, size = 0x12000, scoped, tag = 'internal scratch']
  %s0 = inlined_call_operand.hbm [shape: bf16[4,16,128], index: 0, kind: input, shape index: {}]
  %s1 = inlined_call_operand.hbm [shape: f32[4,16,128], index: 1, kind: input, shape index: {}]
  %s2 = inlined_call_operand.hbm [shape: bf16[16,32], index: 2, kind: input, shape index: {}]
  %s3 = inlined_call_operand.hbm [shape: bf16[128,256], index: 3, kind: input, shape index: {}]
  %s4 = inlined_call_operand.hbm [shape: f32[4,16,128], index: 4, kind: output, shape index: {0}]
  %s5 = inlined_call_operand.hbm [shape: f32[4,16,128], index: 5, kind: output, shape index: {1}]
  %6 = xla_tuple %s4, %s5
  %s7 = sld [smem:[#allocation0]]
  $region50: #{tpu_custom_call.1} parent=0
    _
  %s9 = ssub.s32 1, %s7
  %s10 = scalar_select 0, %s9, %s7
  $region1: #{tpu_custom_call.1} parent=0
    #allocation2 [shape = 'u8[16384]{0}', space=vmem, size = 0x4000, scoped, tag = 'input window, operand 0, single buffered']
    #allocation3 [shape = 's32[1]{0}', space=sflag, size = 0x4, scoped, tag = 'scoped memory for tpu_custom_call.1']
    #allocation4 [shape = 's32[1]{0}', space=sflag, size = 0x4, scoped, tag = 'scoped memory for tpu_custom_call.1']
    #allocation5 [shape = 'u8[32768]{0}', space=vmem, size = 0x8000, scoped, tag = 'input window, operand 1, single buffered']
    #allocation6 [shape = 's32[1]{0}', space=sflag, size = 0x4, scoped, tag = 'scoped memory for tpu_custom_call.1']
    #allocation7 [shape = 'u8[4096]{0}', space=vmem, size = 0x1000, scoped, tag = 'input window, operand 2, single buffered']
    #allocation8 [shape = 'u8[65536]{0}', space=vmem, size = 0x10000, scoped, tag = 'input window, operand 3, single buffered']
    #allocation9 [shape = 's32[1]{0}', space=sflag, size = 0x4, scoped, tag = 'scoped memory for tpu_custom_call.1']
    #allocation10 [shape = 'u8[32768]{0}', space=vmem, size = 0x8000, scoped, tag = 'output window, operand 0, single buffered']
    #allocation11 [shape = 'u8[32768]{0}', space=vmem, size = 0x8000, scoped, tag = 'output window, operand 1, single buffered']
    #allocation12 [shape = 's32[1]{0}', space=sflag, size = 0x4, scoped, tag = 'scoped memory for tpu_custom_call.1']
    %11 = vsyncpa [#allocation3], 0
    %12 = vsyncpa [#allocation6], 0
    %13 = vsyncpa [#allocation9], 0
    %14 = vsyncpa [#allocation4], 0
    %15 = vsyncpa [#allocation12], 0
    // Predicated region
    $region2: #{tpu_custom_call.1} parent=1 // pred_check
      _
    $region3: #{tpu_custom_call.1} parent=1 // pred_check_branch
      %17 = sbr.rel (0) target = $region5
    $region4: #{tpu_custom_call.1} parent=1 // pred_region
      %s19 = ssub.s32 512, 512
      %20 = vsyncadd [#allocation3], %s19
      %s21 = sshll.u32 [#allocation2], 4
      %s22 = int_to_ptr.vmem [resolvable:$true] %s21
      %27 = dma.hbm_to_vmem [thread:$0]  %s0, 512, %s22, [#allocation3], 64, 64, 4
    $region5: #{tpu_custom_call.1} parent=1 // pred_fallthru
      _
    // Predicated region
    $region6: #{tpu_custom_call.1} parent=1 // pred_check
      _
    $region7: #{tpu_custom_call.1} parent=1 // pred_check_branch
      %29 = sbr.rel (0) target = $region9
    $region8: #{tpu_custom_call.1} parent=1 // pred_region
      %s31 = ssub.s32 1024, 1024
      %32 = vsyncadd [#allocation6], %s31
      %s33 = sshll.u32 [#allocation5], 4
      %s34 = int_to_ptr.vmem [resolvable:$true] %s33
      %39 = dma.hbm_to_vmem [thread:$0]  %s1, 1024, %s34, [#allocation6], 128, 128, 8
    $region9: #{tpu_custom_call.1} parent=1 // pred_fallthru
      _
    // Predicated region
    $region10: #{tpu_custom_call.1} parent=1 // pred_check
      _
    $region11: #{tpu_custom_call.1} parent=1 // pred_check_branch
      %41 = sbr.rel (0) target = $region13
    $region12: #{tpu_custom_call.1} parent=1 // pred_region
      %s43 = ssub.s32 128, 128
      %44 = vsyncadd [#allocation6], %s43
      %s45 = sshll.u32 [#allocation7], 4
      %s46 = int_to_ptr.vmem [resolvable:$true] %s45
      %51 = dma.hbm_to_vmem [thread:$0]  %s2, 128, %s46, [#allocation6], 64, 64, 4
    $region13: #{tpu_custom_call.1} parent=1 // pred_fallthru
      _
    // Predicated region
    $region14: #{tpu_custom_call.1} parent=1 // pred_check
      _
    $region15: #{tpu_custom_call.1} parent=1 // pred_check_branch
      %53 = sbr.rel (0) target = $region17
    $region16: #{tpu_custom_call.1} parent=1 // pred_region
      %s55 = ssub.s32 2048, 2048
      %56 = vsyncadd [#allocation9], %s55
      %s57 = sshll.u32 [#allocation8], 4
      %s58 = int_to_ptr.vmem [resolvable:$true] %s57
      %63 = dma.hbm_to_vmem [thread:$0]  %s3, 2048, %s58, [#allocation9], 128, 128, 8
    $region17: #{tpu_custom_call.1} parent=1 // pred_fallthru
      _
    // Predicated region
    $region18: #{tpu_custom_call.1} parent=1 // pred_check
      _
    $region19: #{tpu_custom_call.1} parent=1 // pred_check_branch
      %65 = sbr.rel (0) target = $region21
    $region20: #{tpu_custom_call.1} parent=1 // pred_region
      %66 = dma.done [#allocation3], 512
    $region21: #{tpu_custom_call.1} parent=1 // pred_fallthru
      _
    // Predicated region
    $region22: #{tpu_custom_call.1} parent=1 // pred_check
      _
    $region23: #{tpu_custom_call.1} parent=1 // pred_check_branch
      %68 = sbr.rel (0) target = $region25
    $region24: #{tpu_custom_call.1} parent=1 // pred_region
      %69 = dma.done [#allocation6], 1024
    $region25: #{tpu_custom_call.1} parent=1 // pred_fallthru
      _
    // Predicated region
    $region26: #{tpu_custom_call.1} parent=1 // pred_check
      _
    $region27: #{tpu_custom_call.1} parent=1 // pred_check_branch
      %71 = sbr.rel (0) target = $region29
    $region28: #{tpu_custom_call.1} parent=1 // pred_region
      %72 = dma.done [#allocation6], 128
    $region29: #{tpu_custom_call.1} parent=1 // pred_fallthru
      _
    // Predicated region
    $region30: #{tpu_custom_call.1} parent=1 // pred_check
      _
    $region31: #{tpu_custom_call.1} parent=1 // pred_check_branch
      %74 = sbr.rel (0) target = $region33
    $region32: #{tpu_custom_call.1} parent=1 // pred_region
      %75 = dma.done [#allocation9], 2048
    $region33: #{tpu_custom_call.1} parent=1 // pred_fallthru
      _
    %v77 = vld [vmem:[#allocation5] sm:$0xff]
    %v78 = vld [vmem:[#allocation5 + $0x8] sm:$0xff]
    %v79 = vld [vmem:[#allocation5 + $0x10] sm:$0xff]
    %v80 = vld [vmem:[#allocation5 + $0x18] sm:$0xff]
    %v81 = vld [vmem:[#allocation5 + $0x20] sm:$0xff]
    %v82 = vld [vmem:[#allocation5 + $0x28] sm:$0xff]
    %v83 = vld [vmem:[#allocation5 + $0x30] sm:$0xff]
    %v84 = vld [vmem:[#allocation5 + $0x38] sm:$0xff]
    %v85 = vld [vmem:[#allocation2] sm:$0xf]
    %v86 = vld [vmem:[#allocation2 + $0x4] sm:$0xf]
    %v87 = vld [vmem:[#allocation2 + $0x8] sm:$0xf]
    %v88 = vld [vmem:[#allocation2 + $0xc] sm:$0xf]
    %v89 = vld [vmem:[#allocation2 + $0x10] sm:$0xf]
    %v90 = vld [vmem:[#allocation2 + $0x14] sm:$0xf]
    %v91 = vld [vmem:[#allocation2 + $0x18] sm:$0xf]
    %v92 = vld [vmem:[#allocation2 + $0x1c] sm:$0xf]
    %v93 = vpack.c.bf16 %v78, %v77
    %v94 = vpack.c.bf16 %v80, %v79
    %v95 = vpack.c.bf16 %v82, %v81
    %v96 = vpack.c.bf16 %v84, %v83
    %v105 = vunpack.c.l.b16 %v85
    %v106 = vunpack.c.l.b16 %v86
    %v107 = vunpack.c.l.b16 %v87
    %v108 = vunpack.c.l.b16 %v88
    %v109 = vunpack.c.l.b16 %v89
    %v110 = vunpack.c.l.b16 %v90
    %v111 = vunpack.c.l.b16 %v91
    %v112 = vunpack.c.l.b16 %v92
    %v113 = vpack.c.b16 %v106, %v105
    %v114 = vpack.c.b16 %v108, %v107
    %v115 = vpack.c.b16 %v110, %v109
    %v116 = vpack.c.b16 %v112, %v111
    %v121 = vld [vmem:[#allocation7] sm:$0xf]
    %v122 = vld [vmem:[#allocation7 + $0x4] sm:$0xf]
    %v125 = vunpack.c.l.b16 %v121
    %v126 = vunpack.c.l.b16 %v122
    %v127 = vpack.c.b16 %v126, %v125
    %vm128 = vcmask 261120
    %v130 = vsel %vm128, %v127, 0
    %132 = vmatprep.subr.bf16.mxu0 0
    %133 = vmatpush1.bf16.msra.mxu0 0
    %134 = vmatprep.subr.bf16.mxu0 0
    %135 = vmatpush1.bf16.msra.mxu0 0
    %136 = vmatprep.subr.bf16.mxu0 0
    %137 = vmatpush1.bf16.msra.mxu0 0
    %138 = vmatprep.subr.bf16.mxu0 0
    %139 = vmatpush1.bf16.msra.mxu0 0
    %140 = vmatprep.subr.bf16.mxu0 0
    %141 = vmatpush1.bf16.msra.mxu0 0
    %142 = vmatprep.subr.bf16.mxu0 0
    %143 = vmatpush1.bf16.msra.mxu0 0
    %144 = vmatprep.subr.bf16.mxu0 0
    %145 = vmatpush1.bf16.msra.mxu0 %v93
    %146 = vmatprep.subr.bf16.mxu0 0
    %147 = vmatpush1.bf16.msra.mxu0 %v113
    %148 = vmatprep.subr.bf16.mxu0 0
    %149 = vmatpush2.bf16.msra.mxu0 0
    %150 = vmatprep.subr.bf16.mxu0 0
    %151 = vmatpush2.bf16.msra.mxu0 0
    %152 = vmatprep.subr.bf16.mxu0 0
    %153 = vmatpush2.bf16.msra.mxu0 0
    %154 = vmatprep.subr.bf16.mxu0 0
    %155 = vmatpush2.bf16.msra.mxu0 0
    %156 = vmatprep.subr.bf16.mxu0 0
    %157 = vmatpush2.bf16.msra.mxu0 0
    %158 = vmatprep.subr.bf16.mxu0 0
    %159 = vmatpush2.bf16.msra.mxu0 0
    %160 = vmatprep.subr.bf16.mxu0 0
    %161 = vmatpush2.bf16.msra.mxu0 0
    %162 = vmatprep.subr.bf16.mxu0 0
    %163 = vmatpush2.bf16.msra.mxu0 0
    %164 = vmatprep.mubr.bf16.mxu0 0
    %165 = vmatmul.mubr.bf16.gmra.mxu0 %v130
    %v166 = vpop.f32.mrf.mxu0
    %v167 = vadd.f32 0.0, %v166
    %v168 = vpop.f32.mrf.mxu0
    %v169 = vpop.f32.mrf.mxu0
    %v170 = vadd.f32 0.0, %v169
    %v171 = vpop.f32.mrf.mxu0
    %172 = vdwg.mxu0
    %173 = vmatprep.subr.bf16.mxu0 0
    %174 = vmatpush1.bf16.msra.mxu0 0
    %175 = vmatprep.subr.bf16.mxu0 0
    %176 = vmatpush1.bf16.msra.mxu0 0
    %177 = vmatprep.subr.bf16.mxu0 0
    %178 = vmatpush1.bf16.msra.mxu0 0
    %179 = vmatprep.subr.bf16.mxu0 0
    %180 = vmatpush1.bf16.msra.mxu0 0
    %181 = vmatprep.subr.bf16.mxu0 0
    %182 = vmatpush1.bf16.msra.mxu0 0
    %183 = vmatprep.subr.bf16.mxu0 0
    %184 = vmatpush1.bf16.msra.mxu0 0
    %185 = vmatprep.subr.bf16.mxu0 0
    %186 = vmatpush1.bf16.msra.mxu0 %v94
    %187 = vmatprep.subr.bf16.mxu0 0
    %188 = vmatpush1.bf16.msra.mxu0 %v114
    %189 = vmatprep.subr.bf16.mxu0 0
    %190 = vmatpush2.bf16.msra.mxu0 0
    %191 = vmatprep.subr.bf16.mxu0 0
    %192 = vmatpush2.bf16.msra.mxu0 0
    %193 = vmatprep.subr.bf16.mxu0 0
    %194 = vmatpush2.bf16.msra.mxu0 0
    %195 = vmatprep.subr.bf16.mxu0 0
    %196 = vmatpush2.bf16.msra.mxu0 0
    %197 = vmatprep.subr.bf16.mxu0 0
    %198 = vmatpush2.bf16.msra.mxu0 0
    %199 = vmatprep.subr.bf16.mxu0 0
    %200 = vmatpush2.bf16.msra.mxu0 0
    %201 = vmatprep.subr.bf16.mxu0 0
    %202 = vmatpush2.bf16.msra.mxu0 0
    %203 = vmatprep.subr.bf16.mxu0 0
    %204 = vmatpush2.bf16.msra.mxu0 0
    %205 = vmatprep.mubr.bf16.mxu0 0
    %206 = vmatmul.mubr.bf16.gmra.mxu0 %v130
    %v207 = vpop.f32.mrf.mxu0
    %v208 = vadd.f32 0.0, %v207
    %v209 = vpop.f32.mrf.mxu0
    %v210 = vpop.f32.mrf.mxu0
    %v211 = vadd.f32 0.0, %v210
    %v212 = vpop.f32.mrf.mxu0
    %213 = vdwg.mxu0
    %214 = vmatprep.subr.bf16.mxu0 0
    %215 = vmatpush1.bf16.msra.mxu0 0
    %216 = vmatprep.subr.bf16.mxu0 0
    %217 = vmatpush1.bf16.msra.mxu0 0
    %218 = vmatprep.subr.bf16.mxu0 0
    %219 = vmatpush1.bf16.msra.mxu0 0
    %220 = vmatprep.subr.bf16.mxu0 0
    %221 = vmatpush1.bf16.msra.mxu0 0
    %222 = vmatprep.subr.bf16.mxu0 0
    %223 = vmatpush1.bf16.msra.mxu0 0
    %224 = vmatprep.subr.bf16.mxu0 0
    %225 = vmatpush1.bf16.msra.mxu0 0
    %226 = vmatprep.subr.bf16.mxu0 0
    %227 = vmatpush1.bf16.msra.mxu0 %v95
    %228 = vmatprep.subr.bf16.mxu0 0
    %229 = vmatpush1.bf16.msra.mxu0 %v115
    %230 = vmatprep.subr.bf16.mxu0 0
    %231 = vmatpush2.bf16.msra.mxu0 0
    %232 = vmatprep.subr.bf16.mxu0 0
    %233 = vmatpush2.bf16.msra.mxu0 0
    %234 = vmatprep.subr.bf16.mxu0 0
    %235 = vmatpush2.bf16.msra.mxu0 0
    %236 = vmatprep.subr.bf16.mxu0 0
    %237 = vmatpush2.bf16.msra.mxu0 0
    %238 = vmatprep.subr.bf16.mxu0 0
    %239 = vmatpush2.bf16.msra.mxu0 0
    %240 = vmatprep.subr.bf16.mxu0 0
    %241 = vmatpush2.bf16.msra.mxu0 0
    %242 = vmatprep.subr.bf16.mxu0 0
    %243 = vmatpush2.bf16.msra.mxu0 0
    %244 = vmatprep.subr.bf16.mxu0 0
    %245 = vmatpush2.bf16.msra.mxu0 0
    %246 = vmatprep.mubr.bf16.mxu0 0
    %247 = vmatmul.mubr.bf16.gmra.mxu0 %v130
    %v248 = vpop.f32.mrf.mxu0
    %v249 = vadd.f32 0.0, %v248
    %v250 = vpop.f32.mrf.mxu0
    %v251 = vpop.f32.mrf.mxu0
    %v252 = vadd.f32 0.0, %v251
    %v253 = vpop.f32.mrf.mxu0
    %254 = vdwg.mxu0
    %255 = vmatprep.subr.bf16.mxu0 0
    %256 = vmatpush1.bf16.msra.mxu0 0
    %257 = vmatprep.subr.bf16.mxu0 0
    %258 = vmatpush1.bf16.msra.mxu0 0
    %259 = vmatprep.subr.bf16.mxu0 0
    %260 = vmatpush1.bf16.msra.mxu0 0
    %261 = vmatprep.subr.bf16.mxu0 0
    %262 = vmatpush1.bf16.msra.mxu0 0
    %263 = vmatprep.subr.bf16.mxu0 0
    %264 = vmatpush1.bf16.msra.mxu0 0
    %265 = vmatprep.subr.bf16.mxu0 0
    %266 = vmatpush1.bf16.msra.mxu0 0
    %267 = vmatprep.subr.bf16.mxu0 0
    %268 = vmatpush1.bf16.msra.mxu0 %v96
    %269 = vmatprep.subr.bf16.mxu0 0
    %270 = vmatpush1.bf16.msra.mxu0 %v116
    %271 = vmatprep.subr.bf16.mxu0 0
    %272 = vmatpush2.bf16.msra.mxu0 0
    %273 = vmatprep.subr.bf16.mxu0 0
    %274 = vmatpush2.bf16.msra.mxu0 0
    %275 = vmatprep.subr.bf16.mxu0 0
    %276 = vmatpush2.bf16.msra.mxu0 0
    %277 = vmatprep.subr.bf16.mxu0 0
    %278 = vmatpush2.bf16.msra.mxu0 0
    %279 = vmatprep.subr.bf16.mxu0 0
    %280 = vmatpush2.bf16.msra.mxu0 0
    %281 = vmatprep.subr.bf16.mxu0 0
    %282 = vmatpush2.bf16.msra.mxu0 0
    %283 = vmatprep.subr.bf16.mxu0 0
    %284 = vmatpush2.bf16.msra.mxu0 0
    %285 = vmatprep.subr.bf16.mxu0 0
    %286 = vmatpush2.bf16.msra.mxu0 0
    %287 = vmatprep.mubr.bf16.mxu0 0
    %288 = vmatmul.mubr.bf16.gmra.mxu0 %v130
    %v289 = vpop.f32.mrf.mxu0
    %v290 = vadd.f32 0.0, %v289
    %v291 = vpop.f32.mrf.mxu0
    %v292 = vpop.f32.mrf.mxu0
    %v293 = vadd.f32 0.0, %v292
    %v294 = vpop.f32.mrf.mxu0
    %295 = vdwg.mxu0
    %v296 = vpack.c.bf16 %v170, %v167
    %v297 = vpack.c.bf16 %v211, %v208
    %v298 = vpack.c.bf16 %v252, %v249
    %v299 = vpack.c.bf16 %v293, %v290
    %v300 = vld [vmem:[#allocation8] sm:$0xff]
    %v301 = vld [vmem:[#allocation8 + $0x8] sm:$0xff]
    %v302 = vld [vmem:[#allocation8 + $0x10] sm:$0xff]
    %v303 = vld [vmem:[#allocation8 + $0x18] sm:$0xff]
    %v304 = vld [vmem:[#allocation8 + $0x20] sm:$0xff]
    %v305 = vld [vmem:[#allocation8 + $0x28] sm:$0xff]
    %v306 = vld [vmem:[#allocation8 + $0x30] sm:$0xff]
    %v307 = vld [vmem:[#allocation8 + $0x38] sm:$0xff]
    %v308 = vld [vmem:[#allocation8 + $0x40] sm:$0xff]
    %v309 = vld [vmem:[#allocation8 + $0x48] sm:$0xff]
    %v310 = vld [vmem:[#allocation8 + $0x50] sm:$0xff]
    %v311 = vld [vmem:[#allocation8 + $0x58] sm:$0xff]
    %v312 = vld [vmem:[#allocation8 + $0x60] sm:$0xff]
    %v313 = vld [vmem:[#allocation8 + $0x68] sm:$0xff]
    %v314 = vld [vmem:[#allocation8 + $0x70] sm:$0xff]
    %v315 = vld [vmem:[#allocation8 + $0x78] sm:$0xff]
    %v332 = vunpack.c.l.b16 %v300
    %v333 = vunpack.c.h.b16 %v300
    %v334 = vunpack.c.l.b16 %v301
    %v335 = vunpack.c.h.b16 %v301
    %v336 = vunpack.c.l.b16 %v302
    %v337 = vunpack.c.h.b16 %v302
    %v338 = vunpack.c.l.b16 %v303
    %v339 = vunpack.c.h.b16 %v303
    %v340 = vunpack.c.l.b16 %v304
    %v341 = vunpack.c.h.b16 %v304
    %v342 = vunpack.c.l.b16 %v305
    %v343 = vunpack.c.h.b16 %v305
    %v344 = vunpack.c.l.b16 %v306
    %v345 = vunpack.c.h.b16 %v306
    %v346 = vunpack.c.l.b16 %v307
    %v347 = vunpack.c.h.b16 %v307
    %v348 = vunpack.c.l.b16 %v308
    %v349 = vunpack.c.h.b16 %v308
    %v350 = vunpack.c.l.b16 %v309
    %v351 = vunpack.c.h.b16 %v309
    %v352 = vunpack.c.l.b16 %v310
    %v353 = vunpack.c.h.b16 %v310
    %v354 = vunpack.c.l.b16 %v311
    %v355 = vunpack.c.h.b16 %v311
    %v356 = vunpack.c.l.b16 %v312
    %v357 = vunpack.c.h.b16 %v312
    %v358 = vunpack.c.l.b16 %v313
    %v359 = vunpack.c.h.b16 %v313
    %v360 = vunpack.c.l.b16 %v314
    %v361 = vunpack.c.h.b16 %v314
    %v362 = vunpack.c.l.b16 %v315
    %v363 = vunpack.c.h.b16 %v315
    %v364 = vpack.c.b16 %v334, %v332
    %v365 = vpack.c.b16 %v335, %v333
    %v366 = vpack.c.b16 %v338, %v336
    %v367 = vpack.c.b16 %v339, %v337
    %v368 = vpack.c.b16 %v342, %v340
    %v369 = vpack.c.b16 %v343, %v341
    %v370 = vpack.c.b16 %v346, %v344
    %v371 = vpack.c.b16 %v347, %v345
    %v372 = vpack.c.b16 %v350, %v348
    %v373 = vpack.c.b16 %v351, %v349
    %v374 = vpack.c.b16 %v354, %v352
    %v375 = vpack.c.b16 %v355, %v353
    %v376 = vpack.c.b16 %v358, %v356
    %v377 = vpack.c.b16 %v359, %v357
    %v378 = vpack.c.b16 %v362, %v360
    %v379 = vpack.c.b16 %v363, %v361
    %396 = vmatprep.subr.bf16.mxu0 %v379
    %397 = vmatpush1.bf16.msra.mxu0 %v378
    %398 = vmatprep.subr.bf16.mxu0 %v377
    %399 = vmatpush1.bf16.msra.mxu0 %v376
    %400 = vmatprep.subr.bf16.mxu0 %v375
    %401 = vmatpush1.bf16.msra.mxu0 %v374
    %402 = vmatprep.subr.bf16.mxu0 %v373
    %403 = vmatpush1.bf16.msra.mxu0 %v372
    %404 = vmatprep.subr.bf16.mxu0 %v371
    %405 = vmatpush1.bf16.msra.mxu0 %v370
    %406 = vmatprep.subr.bf16.mxu0 %v369
    %407 = vmatpush1.bf16.msra.mxu0 %v368
    %408 = vmatprep.subr.bf16.mxu0 %v367
    %409 = vmatpush1.bf16.msra.mxu0 %v366
    %410 = vmatprep.subr.bf16.mxu0 %v365
    %411 = vmatpush1.bf16.msra.mxu0 %v364
    %412 = vmatprep.subr.bf16.mxu0 0
    %413 = vmatpush2.bf16.msra.mxu0 0
    %414 = vmatprep.subr.bf16.mxu0 0
    %415 = vmatpush2.bf16.msra.mxu0 0
    %416 = vmatprep.subr.bf16.mxu0 0
    %417 = vmatpush2.bf16.msra.mxu0 0
    %418 = vmatprep.subr.bf16.mxu0 0
    %419 = vmatpush2.bf16.msra.mxu0 0
    %420 = vmatprep.subr.bf16.mxu0 0
    %421 = vmatpush2.bf16.msra.mxu0 0
    %422 = vmatprep.subr.bf16.mxu0 0
    %423 = vmatpush2.bf16.msra.mxu0 0
    %424 = vmatprep.subr.bf16.mxu0 0
    %425 = vmatpush2.bf16.msra.mxu0 0
    %426 = vmatprep.subr.bf16.mxu0 0
    %427 = vmatpush2.bf16.msra.mxu0 0
    %428 = vmatprep.mubr.bf16.mxu0 0
    %429 = vmatmul.mubr.bf16.gmra.mxu0 %v296
    %v430 = vpop.f32.mrf.mxu0
    %v431 = vadd.f32 0.0, %v430
    %v432 = vpop.f32.mrf.mxu0
    %v433 = vadd.f32 0.0, %v432
    %v434 = vpop.f32.mrf.mxu0
    %v435 = vadd.f32 0.0, %v434
    %v436 = vpop.f32.mrf.mxu0
    %v437 = vadd.f32 0.0, %v436
    %438 = vmatprep.mubr.bf16.mxu0 0
    %439 = vmatmul.mubr.bf16.gmra.mxu0 %v297
    %v440 = vpop.f32.mrf.mxu0
    %v441 = vadd.f32 0.0, %v440
    %v442 = vpop.f32.mrf.mxu0
    %v443 = vadd.f32 0.0, %v442
    %v444 = vpop.f32.mrf.mxu0
    %v445 = vadd.f32 0.0, %v444
    %v446 = vpop.f32.mrf.mxu0
    %v447 = vadd.f32 0.0, %v446
    %448 = vmatprep.mubr.bf16.mxu0 0
    %449 = vmatmul.mubr.bf16.gmra.mxu0 %v298
    %v450 = vpop.f32.mrf.mxu0
    %v451 = vadd.f32 0.0, %v450
    %v452 = vpop.f32.mrf.mxu0
    %v453 = vadd.f32 0.0, %v452
    %v454 = vpop.f32.mrf.mxu0
    %v455 = vadd.f32 0.0, %v454
    %v456 = vpop.f32.mrf.mxu0
    %v457 = vadd.f32 0.0, %v456
    %458 = vmatprep.mubr.bf16.mxu0 0
    %459 = vmatmul.mubr.bf16.gmra.mxu0 %v299
    %v460 = vpop.f32.mrf.mxu0
    %v461 = vadd.f32 0.0, %v460
    %v462 = vpop.f32.mrf.mxu0
    %v463 = vadd.f32 0.0, %v462
    %v464 = vpop.f32.mrf.mxu0
    %v465 = vadd.f32 0.0, %v464
    %v466 = vpop.f32.mrf.mxu0
    %v467 = vadd.f32 0.0, %v466
    %468 = vdwg.mxu0
    %v469 = vadd.f32 %v77, %v431
    %v470 = vadd.f32 %v78, %v435
    %v471 = vadd.f32 %v79, %v441
    %v472 = vadd.f32 %v80, %v445
    %v473 = vadd.f32 %v81, %v451
    %v474 = vadd.f32 %v82, %v455
    %v475 = vadd.f32 %v83, %v461
    %v476 = vadd.f32 %v84, %v465
    %477 = vst [vmem:[#allocation10] sm:$0xff] %v469
    %478 = vst [vmem:[#allocation10 + $0x8] sm:$0xff] %v470
    %479 = vst [vmem:[#allocation10 + $0x10] sm:$0xff] %v471
    %480 = vst [vmem:[#allocation10 + $0x18] sm:$0xff] %v472
    %481 = vst [vmem:[#allocation10 + $0x20] sm:$0xff] %v473
    %482 = vst [vmem:[#allocation10 + $0x28] sm:$0xff] %v474
    %483 = vst [vmem:[#allocation10 + $0x30] sm:$0xff] %v475
    %484 = vst [vmem:[#allocation10 + $0x38] sm:$0xff] %v476
    %v485 = vadd.f32 %v77, %v433
    %v486 = vadd.f32 %v78, %v437
    %v487 = vadd.f32 %v79, %v443
    %v488 = vadd.f32 %v80, %v447
    %v489 = vadd.f32 %v81, %v453
    %v490 = vadd.f32 %v82, %v457
    %v491 = vadd.f32 %v83, %v463
    %v492 = vadd.f32 %v84, %v467
    %493 = vst [vmem:[#allocation11] sm:$0xff] %v485
    %494 = vst [vmem:[#allocation11 + $0x8] sm:$0xff] %v486
    %495 = vst [vmem:[#allocation11 + $0x10] sm:$0xff] %v487
    %496 = vst [vmem:[#allocation11 + $0x18] sm:$0xff] %v488
    %497 = vst [vmem:[#allocation11 + $0x20] sm:$0xff] %v489
    %498 = vst [vmem:[#allocation11 + $0x28] sm:$0xff] %v490
    %499 = vst [vmem:[#allocation11 + $0x30] sm:$0xff] %v491
    %500 = vst [vmem:[#allocation11 + $0x38] sm:$0xff] %v492
    // Predicated region
    $region34: #{tpu_custom_call.1} parent=1 // pred_check
      _
    $region35: #{tpu_custom_call.1} parent=1 // pred_check_branch
      %502 = sbr.rel (0) target = $region37
    $region36: #{tpu_custom_call.1} parent=1 // pred_region
      %s504 = ssub.s32 1024, 1024
      %505 = vsyncadd [#allocation4], %s504
      %s506 = sshll.u32 [#allocation10], 4
      %s507 = int_to_ptr.vmem [resolvable:$true] %s506
      %512 = dma.vmem_to_hbm [thread:$0]  %s507, 1024, %s4, [#allocation4], 128, 128, 8
    $region37: #{tpu_custom_call.1} parent=1 // pred_fallthru
      _
    // Predicated region
    $region38: #{tpu_custom_call.1} parent=1 // pred_check
      _
    $region39: #{tpu_custom_call.1} parent=1 // pred_check_branch
      %514 = sbr.rel (0) target = $region41
    $region40: #{tpu_custom_call.1} parent=1 // pred_region
      %s516 = ssub.s32 1024, 1024
      %517 = vsyncadd [#allocation12], %s516
      %s518 = sshll.u32 [#allocation11], 4
      %s519 = int_to_ptr.vmem [resolvable:$true] %s518
      %524 = dma.vmem_to_hbm [thread:$0]  %s519, 1024, %s5, [#allocation12], 128, 128, 8
    $region41: #{tpu_custom_call.1} parent=1 // pred_fallthru
      _
    // Predicated region
    $region42: #{tpu_custom_call.1} parent=1 // pred_check
      _
    $region43: #{tpu_custom_call.1} parent=1 // pred_check_branch
      %526 = sbr.rel (0) target = $region45
    $region44: #{tpu_custom_call.1} parent=1 // pred_region
      %527 = dma.done [#allocation4], 1024
    $region45: #{tpu_custom_call.1} parent=1 // pred_fallthru
      _
    // Predicated region
    $region46: #{tpu_custom_call.1} parent=1 // pred_check
      _
    $region47: #{tpu_custom_call.1} parent=1 // pred_check_branch
      %529 = sbr.rel (0) target = $region49
    $region48: #{tpu_custom_call.1} parent=1 // pred_region
      %530 = dma.done [#allocation12], 1024
    $region49: #{tpu_custom_call.1} parent=1 // pred_fallthru
      _
    %531 = vsyncpa [#allocation3], 1
    %532 = vsyncpa [#allocation6], 1
    %533 = vsyncpa [#allocation9], 1
    %534 = vsyncpa [#allocation4], 1
    %535 = vsyncpa [#allocation12], 1

</llo_original>
